<compile_context>
chip_gen: v5e
topology: v5e:2x2
jax: 0.10.0
libtpu: 0.0.40
codegen_flags: <defaults>
</compile_context>

<pallas_src>
import functools
import math

import jax
import jax.numpy as jnp
from jax import lax
from jax.experimental import pallas as pl
from jax.experimental.pallas import tpu as pltpu

# Full-f32 matmuls everywhere so the Pallas kernel and the jnp reference agree.
jax.config.update("jax_default_matmul_precision", "highest")


def _attention_kernel(x_ref, w_ref, b_ref, o_ref, *, a_pad, attention_size):
    """One batch item: x_ref [S, D_in], w_ref [D_in, 3*a_pad], b_ref [1, 3*a_pad],
    o_ref [S, attention_size]."""
    x = x_ref[...]                                                      # [S, D_in]

    # Fused QKV projection: one wide MXU matmul (f32 accumulation) + one bias add.
    # 1/sqrt(attention_size) is already folded into the Q segment of w/b.
    qkv = jnp.dot(x, w_ref[...], preferred_element_type=jnp.float32) + b_ref[...]

    q = qkv[:, 0 * a_pad:1 * a_pad]                                     # pre-scaled Q
    k = qkv[:, 1 * a_pad:2 * a_pad]
    v = qkv[:, 2 * a_pad:2 * a_pad + attention_size]                    # real-width V

    # attention_scores = (Q / sqrt(A)) @ K^T; transpose absorbed into the
    # contraction (contract last dim of both operands).  Padded K lanes are 0.
    scores = lax.dot_general(
        q, k,
        dimension_numbers=(((1,), (1,)), ((), ())),
        preferred_element_type=jnp.float32,
    )                                                                   # [S, S]

    # Numerically-stable softmax (exact divide: rows sum to 1 in f32).
    m = jnp.max(scores, axis=-1, keepdims=True)
    e = jnp.exp(scores - m)
    denom = jnp.sum(e, axis=-1, keepdims=True)
    weights = e / denom

    out = jnp.dot(weights, v, preferred_element_type=jnp.float32)       # [S, A]
    o_ref[...] = out.astype(o_ref.dtype)


def make_fused_params(wq, wk, wv, bq, bk, bv, attention_size):
    """One-time parameter preprocessing (hoisted out of the per-call path).

    Weights are [input_size, attention_size] (pre-transposed vs. nn.Linear.weight).
    Returns (w_fused [D_in, 3*a_pad], b_fused [1, 3*a_pad], a_pad) with the Q
    segment pre-multiplied by 1/sqrt(attention_size) and each segment
    zero-padded to a 128-lane slot.
    """
    a_pad = max(128, ((attention_size + 127) // 128) * 128)
    pad = a_pad - attention_size
    inv_scale = 1.0 / math.sqrt(float(attention_size))

    def pad_w(w):
        return jnp.pad(w, ((0, 0), (0, pad)))          # zero pad => padded K/V cols are 0

    def pad_b(b):
        return jnp.pad(b, (0, pad))

    w_fused = jnp.concatenate(
        [pad_w(wq) * inv_scale, pad_w(wk), pad_w(wv)], axis=1)          # [D_in, 3*a_pad]
    b_fused = jnp.concatenate(
        [pad_b(bq) * inv_scale, pad_b(bk), pad_b(bv)]).reshape(1, 3 * a_pad)
    return w_fused, b_fused, a_pad


def attention_forward(x, w_fused, b_fused, attention_size, a_pad):
    """x: [seq, input_size] (module semantics) or [batch, seq, input_size]."""
    squeeze = x.ndim == 2
    if squeeze:
        x = x[None]                                    # B = 1
    batch, seq, d_in = x.shape

    kernel = pl.pallas_call(
        functools.partial(_attention_kernel, a_pad=a_pad, attention_size=attention_size),
        grid=(batch,),
        out_shape=jax.ShapeDtypeStruct((batch, seq, attention_size), x.dtype),
        in_specs=[
            # Per-item activation tile (batch dim squeezed away in the kernel).
            pl.BlockSpec((None, seq, d_in), lambda b: (b, 0, 0)),
            # Fused weight / bias: constant block index -> DMA'd once, resident.
            pl.BlockSpec(w_fused.shape, lambda b: (0, 0)),
            pl.BlockSpec(b_fused.shape, lambda b: (0, 0)),
        ],
        out_specs=pl.BlockSpec((None, seq, attention_size), lambda b: (b, 0, 0)),
        compiler_params=pltpu.CompilerParams(dimension_semantics=("parallel",)),
    )
    out = kernel(x, w_fused, b_fused)
    return out[0] if squeeze else out


def _reference(x, wq, wk, wv, bq, bk, bv, attention_size):
    q = x @ wq + bq
    k = x @ wk + bk
    v = x @ wv + bv
    scores = (q @ k.T) / jnp.sqrt(jnp.float32(attention_size))
    w = jax.nn.softmax(scores, axis=-1)
    return w @ v


if __name__ == "__main__":
    seq = 8
    input_size = 32
    attention_size = 16
    batch = 4

    key = jax.random.PRNGKey(0)
    kx, kxb, kq, kk, kv, kbq, kbk, kbv = jax.random.split(key, 8)

    x = jax.random.normal(kx, (seq, input_size), dtype=jnp.float32)
    x_batch = jax.random.normal(kxb, (batch, seq, input_size), dtype=jnp.float32)

    # Deterministic parameter init (uniform, roughly matching nn.Linear scale).
    bound = 1.0 / math.sqrt(input_size)
    wq = jax.random.uniform(kq, (input_size, attention_size), jnp.float32, -bound, bound)
    wk = jax.random.uniform(kk, (input_size, attention_size), jnp.float32, -bound, bound)
    wv = jax.random.uniform(kv, (input_size, attention_size), jnp.float32, -bound, bound)
    bq = jax.random.uniform(kbq, (attention_size,), jnp.float32, -bound, bound)
    bk = jax.random.uniform(kbk, (attention_size,), jnp.float32, -bound, bound)
    bv = jax.random.uniform(kbv, (attention_size,), jnp.float32, -bound, bound)

    # One-time fused-parameter construction (not repeated per forward call).
    w_fused, b_fused, a_pad = make_fused_params(wq, wk, wv, bq, bk, bv, attention_size)
    w_fused = jax.block_until_ready(w_fused)
    b_fused = jax.block_until_ready(b_fused)

    # Single 2-D input: exactly the PyTorch module's forward.
    out = attention_forward(x, w_fused, b_fused, attention_size, a_pad)
    out = jax.block_until_ready(out)
    ref = _reference(x, wq, wk, wv, bq, bk, bv, attention_size)
    assert out.shape == (seq, attention_size)
    assert jnp.allclose(out, ref, atol=1e-3, rtol=1e-3), "mismatch vs reference (2-D)"

    # Batched call: same weights, grid over batch, weights resident across steps.
    out_b = attention_forward(x_batch, w_fused, b_fused, attention_size, a_pad)
    out_b = jax.block_until_ready(out_b)
    ref_b = jax.vmap(
        lambda xi: _reference(xi, wq, wk, wv, bq, bk, bv, attention_size))(x_batch)
    assert out_b.shape == (batch, seq, attention_size)
    assert jnp.allclose(out_b, ref_b, atol=1e-3, rtol=1e-3), "mismatch vs reference (batched)"

    print("KERNEL_OK")
</pallas_src>

<mosaic_0001>
module attributes {stable_mosaic.version = 11 : i64} {
  func.func @_attention_kernel(%arg0: i32, %arg1: memref<1x8x32xf32, #tpu.memory_space<vmem>>, %arg2: memref<32x384xf32, #tpu.memory_space<vmem>>, %arg3: memref<1x384xf32, #tpu.memory_space<vmem>>, %arg4: memref<1x8x16xf32, #tpu.memory_space<vmem>>) attributes {dimension_semantics = [#tpu.dimension_semantics<parallel>], iteration_bounds = array<i64: 1>, scalar_prefetch = 0 : i64, scratch_operands = 0 : i64, tpu.core_type = #tpu.core_type<tc>, window_params = [{transform_indices = @transform_0, window_bounds = array<i64: 1, 8, 32>}, {pipeline_mode = #tpu.pipeline_mode<synchronous>, transform_indices = @transform_1, window_bounds = array<i64: 32, 384>}, {pipeline_mode = #tpu.pipeline_mode<synchronous>, transform_indices = @transform_2, window_bounds = array<i64: 1, 384>}, {transform_indices = @transform_3, window_bounds = array<i64: 1, 8, 16>}]} {
    %c0 = arith.constant 0 : index
    %c0_0 = arith.constant 0 : index
    %c0_1 = arith.constant 0 : index
    %0 = vector.load %arg1[%c0, %c0_0, %c0_1] : memref<1x8x32xf32, #tpu.memory_space<vmem>>, vector<1x8x32xf32>
    %1 = vector.shape_cast %0 : vector<1x8x32xf32> to vector<8x32xf32>
    %c0_2 = arith.constant 0 : index
    %c0_3 = arith.constant 0 : index
    %2 = vector.load %arg2[%c0_2, %c0_3] : memref<32x384xf32, #tpu.memory_space<vmem>>, vector<32x384xf32>
    %cst = arith.constant dense<0.000000e+00> : vector<8x384xf32>
    %3 = tpu.matmul %1, %2, %cst {dimension_numbers = #tpu.dot_dimension_numbers<[1], [0], [0], [1], [0, 0, 1, 1], [], []>, precision = #tpu.contract_precision<fp32>} : vector<8x32xf32>, vector<32x384xf32>, vector<8x384xf32> -> vector<8x384xf32>
    %c0_4 = arith.constant 0 : index
    %c0_5 = arith.constant 0 : index
    %4 = vector.load %arg3[%c0_4, %c0_5] : memref<1x384xf32, #tpu.memory_space<vmem>>, vector<1x384xf32>
    %5 = vector.broadcast %4 : vector<1x384xf32> to vector<8x384xf32>
    %6 = arith.addf %3, %5 : vector<8x384xf32>
    %7 = vector.extract_strided_slice %6 {offsets = [0, 0], sizes = [8, 128], strides = [1, 1]} : vector<8x384xf32> to vector<8x128xf32>
    %8 = vector.extract_strided_slice %6 {offsets = [0, 128], sizes = [8, 128], strides = [1, 1]} : vector<8x384xf32> to vector<8x128xf32>
    %9 = vector.extract_strided_slice %6 {offsets = [0, 256], sizes = [8, 16], strides = [1, 1]} : vector<8x384xf32> to vector<8x16xf32>
    %cst_6 = arith.constant dense<0.000000e+00> : vector<8x8xf32>
    %10 = tpu.matmul %7, %8, %cst_6 {dimension_numbers = #tpu.dot_dimension_numbers<[1], [1], [0], [0], [0, 0, 1, 0], [], []>, precision = #tpu.contract_precision<fp32>} : vector<8x128xf32>, vector<8x128xf32>, vector<8x8xf32> -> vector<8x8xf32>
    %cst_7 = arith.constant dense<0xFF800000> : vector<8xf32>
    %11 = vector.multi_reduction <maximumf>, %10, %cst_7 [1] : vector<8x8xf32> to vector<8xf32>
    %12 = vector.shape_cast %11 : vector<8xf32> to vector<8x1xf32>
    %13 = vector.broadcast %12 : vector<8x1xf32> to vector<8x8xf32>
    %14 = arith.subf %10, %13 : vector<8x8xf32>
    %15 = math.exp %14 : vector<8x8xf32>
    %cst_8 = arith.constant dense<0.000000e+00> : vector<8xf32>
    %16 = vector.multi_reduction <add>, %15, %cst_8 [1] : vector<8x8xf32> to vector<8xf32>
    %17 = vector.shape_cast %16 : vector<8xf32> to vector<8x1xf32>
    %18 = vector.broadcast %17 : vector<8x1xf32> to vector<8x8xf32>
    %19 = arith.divf %15, %18 : vector<8x8xf32>
    %cst_9 = arith.constant dense<0.000000e+00> : vector<8x16xf32>
    %20 = tpu.matmul %19, %9, %cst_9 {dimension_numbers = #tpu.dot_dimension_numbers<[1], [0], [0], [1], [0, 0, 1, 1], [], []>, precision = #tpu.contract_precision<fp32>} : vector<8x8xf32>, vector<8x16xf32>, vector<8x16xf32> -> vector<8x16xf32>
    %c0_10 = arith.constant 0 : index
    %c0_11 = arith.constant 0 : index
    %c0_12 = arith.constant 0 : index
    %21 = vector.load %arg4[%c0_10, %c0_11, %c0_12] : memref<1x8x16xf32, #tpu.memory_space<vmem>>, vector<1x8x16xf32>
    %22 = vector.shape_cast %21 : vector<1x8x16xf32> to vector<8x16xf32>
    %23 = vector.shape_cast %20 : vector<8x16xf32> to vector<1x8x16xf32>
    tpu.vector_store %arg4[%c0_10, %c0_11, %c0_12], %23 {strides = array<i32>} : memref<1x8x16xf32, #tpu.memory_space<vmem>>, vector<1x8x16xf32>,
    return
  }
  func.func @transform_0(%arg0: i32) -> (i32, i32, i32) {
    %c0_i32 = arith.constant 0 : i32
    %c0_i32_0 = arith.constant 0 : i32
    %c0_i32_1 = arith.constant 0 : i32
    return %arg0, %c0_i32, %c0_i32_0 : i32, i32, i32
  }
  func.func @transform_1(%arg0: i32) -> (i32, i32) {
    %c0_i32 = arith.constant 0 : i32
    %c0_i32_0 = arith.constant 0 : i32
    %c0_i32_1 = arith.constant 0 : i32
    return %c0_i32, %c0_i32_0 : i32, i32
  }
  func.func @transform_2(%arg0: i32) -> (i32, i32) {
    %c0_i32 = arith.constant 0 : i32
    %c0_i32_0 = arith.constant 0 : i32
    %c0_i32_1 = arith.constant 0 : i32
    return %c0_i32, %c0_i32_0 : i32, i32
  }
  func.func @transform_3(%arg0: i32) -> (i32, i32, i32) {
    %c0_i32 = arith.constant 0 : i32
    %c0_i32_0 = arith.constant 0 : i32
    %c0_i32_1 = arith.constant 0 : i32
    return %arg0, %c0_i32, %c0_i32_0 : i32, i32, i32
  }
}

</mosaic_0001>

<llo_original>
// kernel: tpu_custom_call.1
$region0: #{tpu_custom_call.1}
  #allocation0 [shape = 'u32[]', space=smem, size = 0x4, offset = 0x4, fixed_abs, tag = 'smem constant byte address 0x4 - core index']
  #allocation1 [shape = 'u32[72,128]{1,0:T(1,128)}', space=vmem, size = 0x9000, scoped, tag = 'internal scratch']
  %s0 = inlined_call_operand.hbm [shape: f32[1,8,32], index: 0, kind: input, shape index: {}]
  %s1 = inlined_call_operand.hbm [shape: f32[32,384], index: 1, kind: input, shape index: {}]
  %s2 = inlined_call_operand.hbm [shape: f32[1,384], index: 2, kind: input, shape index: {}]
  %s3 = inlined_call_operand.hbm [shape: f32[1,8,16], index: 3, kind: output, shape index: {}]
  %s4 = sld [smem:[#allocation0]]
  $region34: #{tpu_custom_call.1} parent=0
    _
  %s6 = ssub.s32 1, %s4
  %s7 = scalar_select 0, %s6, %s4
  $region1: #{tpu_custom_call.1} parent=0
    #allocation2 [shape = 'u8[4096]{0}', space=vmem, size = 0x1000, scoped, tag = 'input window, operand 0, single buffered']
    #allocation3 [shape = 's32[1]{0}', space=sflag, size = 0x4, scoped, tag = 'scoped memory for tpu_custom_call.1']
    #allocation4 [shape = 's32[1]{0}', space=sflag, size = 0x4, scoped, tag = 'scoped memory for tpu_custom_call.1']
    #allocation5 [shape = 'u8[49152]{0}', space=vmem, size = 0xc000, scoped, tag = 'input window, operand 1, single buffered']
    #allocation6 [shape = 's32[1]{0}', space=sflag, size = 0x4, scoped, tag = 'scoped memory for tpu_custom_call.1']
    #allocation7 [shape = 'u8[1536]{0}', space=vmem, size = 0x800, scoped, tag = 'input window, operand 2, single buffered']
    #allocation8 [shape = 'u8[4096]{0}', space=vmem, size = 0x1000, scoped, tag = 'output window, operand 0, single buffered']
    %8 = vsyncpa [#allocation3], 0
    %9 = vsyncpa [#allocation6], 0
    %10 = vsyncpa [#allocation4], 0
    // Predicated region
    $region2: #{tpu_custom_call.1} parent=1 // pred_check
      _
    $region3: #{tpu_custom_call.1} parent=1 // pred_check_branch
      %12 = sbr.rel (0) target = $region5
    $region4: #{tpu_custom_call.1} parent=1 // pred_region
      %14 = vsyncadd [#allocation3], 0
      %s16 = sshll.u32 %s0, 4
      %s17 = int_to_ptr.hbm [resolvable:$true] %s16
      %s18 = sshll.u32 [#allocation2], 4
      %s19 = int_to_ptr.vmem [resolvable:$true] %s18
      %21 = dma.hbm_to_vmem [thread:$0]  %s17, 128, %s19, [#allocation3]
    $region5: #{tpu_custom_call.1} parent=1 // pred_fallthru
      _
    // Predicated region
    $region6: #{tpu_custom_call.1} parent=1 // pred_check
      _
    $region7: #{tpu_custom_call.1} parent=1 // pred_check_branch
      %23 = sbr.rel (0) target = $region9
    $region8: #{tpu_custom_call.1} parent=1 // pred_region
      %25 = vsyncadd [#allocation6], 0
      %s26 = sshll.u32 %s1, 4
      %s27 = int_to_ptr.hbm [resolvable:$true] %s26
      %s28 = sshll.u32 [#allocation5], 4
      %s29 = int_to_ptr.vmem [resolvable:$true] %s28
      %34 = dma.hbm_to_vmem [thread:$0]  %s27, 1536, %s29, [#allocation6], 384, 384, 24
    $region9: #{tpu_custom_call.1} parent=1 // pred_fallthru
      _
    // Predicated region
    $region10: #{tpu_custom_call.1} parent=1 // pred_check
      _
    $region11: #{tpu_custom_call.1} parent=1 // pred_check_branch
      %36 = sbr.rel (0) target = $region13
    $region12: #{tpu_custom_call.1} parent=1 // pred_region
      %38 = vsyncadd [#allocation6], 0
      %s40 = sshll.u32 %s2, 4
      %s41 = int_to_ptr.hbm [resolvable:$true] %s40
      %s42 = sshll.u32 [#allocation7], 4
      %s43 = int_to_ptr.vmem [resolvable:$true] %s42
      %45 = dma.hbm_to_vmem [thread:$0]  %s41, 48, %s43, [#allocation6]
    $region13: #{tpu_custom_call.1} parent=1 // pred_fallthru
      _
    // Predicated region
    $region14: #{tpu_custom_call.1} parent=1 // pred_check
      _
    $region15: #{tpu_custom_call.1} parent=1 // pred_check_branch
      %47 = sbr.rel (0) target = $region17
    $region16: #{tpu_custom_call.1} parent=1 // pred_region
      %49 = dma.done [#allocation3], 128
    $region17: #{tpu_custom_call.1} parent=1 // pred_fallthru
      _
    // Predicated region
    $region18: #{tpu_custom_call.1} parent=1 // pred_check
      _
    $region19: #{tpu_custom_call.1} parent=1 // pred_check_branch
      %51 = sbr.rel (0) target = $region21
    $region20: #{tpu_custom_call.1} parent=1 // pred_region
      %53 = dma.done [#allocation6], 1536
    $region21: #{tpu_custom_call.1} parent=1 // pred_fallthru
      _
    // Predicated region
    $region22: #{tpu_custom_call.1} parent=1 // pred_check
      _
    $region23: #{tpu_custom_call.1} parent=1 // pred_check_branch
      %55 = sbr.rel (0) target = $region25
    $region24: #{tpu_custom_call.1} parent=1 // pred_region
      %57 = dma.done [#allocation6], 48
    $region25: #{tpu_custom_call.1} parent=1 // pred_fallthru
      _
    %v58 = vld [vmem:[#allocation2] sm:$0xff]
    %v59 = vld [vmem:[#allocation5] sm:$0xff]
    %v60 = vld [vmem:[#allocation5 + $0x8] sm:$0xff]
    %v61 = vld [vmem:[#allocation5 + $0x10] sm:$0xff]
    %v62 = vld [vmem:[#allocation5 + $0x18] sm:$0xff]
    %v63 = vld [vmem:[#allocation5 + $0x20] sm:$0xff]
    %v64 = vld [vmem:[#allocation5 + $0x28] sm:$0xff]
    %v65 = vld [vmem:[#allocation5 + $0x30] sm:$0xff]
    %v66 = vld [vmem:[#allocation5 + $0x38] sm:$0xff]
    %v67 = vld [vmem:[#allocation5 + $0x40] sm:$0xff]
    %v68 = vld [vmem:[#allocation5 + $0x48] sm:$0xff]
    %v69 = vld [vmem:[#allocation5 + $0x50] sm:$0xff]
    %v70 = vld [vmem:[#allocation5 + $0x58] sm:$0xff]
    %v71 = vld [vmem:[#allocation7] sm:$0x7]
    %v73 = vperm.slane %v71, 0
    %v74 = vperm.slane %v71, 1
    %v75 = vperm.slane %v71, 2
    %vm79 = vcmask 261120
    %v81 = vsel %vm79, %v58, 0
    %83 = vmatpush.msra.mxu0 0.0
    %84 = vmatpush.msra.mxu0 0.0
    %85 = vmatpush.msra.mxu0 0.0
    %86 = vmatpush.msra.mxu0 0.0
    %87 = vmatpush.msra.mxu0 0.0
    %88 = vmatpush.msra.mxu0 0.0
    %89 = vmatpush.msra.mxu0 0.0
    %90 = vmatpush.msra.mxu0 0.0
    %91 = vmatpush.msra.mxu0 0.0
    %92 = vmatpush.msra.mxu0 0.0
    %93 = vmatpush.msra.mxu0 0.0
    %94 = vmatpush.msra.mxu0 0.0
    %v95 = vand.u32 %v68, 4294901760
    %96 = vmatpush.msra.mxu0 %v95
    %v97 = vand.u32 %v65, 4294901760
    %98 = vmatpush.msra.mxu0 %v97
    %v99 = vand.u32 %v62, 4294901760
    %100 = vmatpush.msra.mxu0 %v99
    %v101 = vand.u32 %v59, 4294901760
    %102 = vmatpush.msra.mxu0 %v101
    %v103 = vand.u32 %v81, 4294901760
    %v104 = vsub.f32 %v81, %v103
    %v105 = vand.u32 %v104, 4294901760
    %v106 = vsub.f32 %v104, %v105
    %v107 = vand.u32 %v106, 4294901760
    %108 = vmatmul.f32.gmra.mxu0 %v107
    %v109 = vpop.f32.mrf.mxu0
    %v110 = vadd.f32 %v73, %v109
    %111 = vdwg.mxu0
    %112 = vmatpush.msra.mxu0 0.0
    %113 = vmatpush.msra.mxu0 0.0
    %114 = vmatpush.msra.mxu0 0.0
    %115 = vmatpush.msra.mxu0 0.0
    %116 = vmatpush.msra.mxu0 0.0
    %117 = vmatpush.msra.mxu0 0.0
    %118 = vmatpush.msra.mxu0 0.0
    %119 = vmatpush.msra.mxu0 0.0
    %120 = vmatpush.msra.mxu0 0.0
    %121 = vmatpush.msra.mxu0 0.0
    %122 = vmatpush.msra.mxu0 0.0
    %123 = vmatpush.msra.mxu0 0.0
    %v124 = vand.u32 %v68, 4294901760
    %v125 = vsub.f32 %v68, %v124
    %v126 = vand.u32 %v125, 4294901760
    %v127 = vsub.f32 %v125, %v126
    %v128 = vand.u32 %v127, 4294901760
    %129 = vmatpush.msra.mxu0 %v128
    %v130 = vand.u32 %v65, 4294901760
    %v131 = vsub.f32 %v65, %v130
    %v132 = vand.u32 %v131, 4294901760
    %v133 = vsub.f32 %v131, %v132
    %v134 = vand.u32 %v133, 4294901760
    %135 = vmatpush.msra.mxu0 %v134
    %v136 = vand.u32 %v62, 4294901760
    %v137 = vsub.f32 %v62, %v136
    %v138 = vand.u32 %v137, 4294901760
    %v139 = vsub.f32 %v137, %v138
    %v140 = vand.u32 %v139, 4294901760
    %141 = vmatpush.msra.mxu0 %v140
    %v142 = vand.u32 %v59, 4294901760
    %v143 = vsub.f32 %v59, %v142
    %v144 = vand.u32 %v143, 4294901760
    %v145 = vsub.f32 %v143, %v144
    %v146 = vand.u32 %v145, 4294901760
    %147 = vmatpush.msra.mxu0 %v146
    %v148 = vand.u32 %v81, 4294901760
    %149 = vmatmul.f32.gmra.mxu0 %v148
    %v150 = vpop.f32.mrf.mxu0
    %v151 = vadd.f32 %v110, %v150
    %152 = vdwg.mxu0
    %153 = vmatpush.msra.mxu0 0.0
    %154 = vmatpush.msra.mxu0 0.0
    %155 = vmatpush.msra.mxu0 0.0
    %156 = vmatpush.msra.mxu0 0.0
    %157 = vmatpush.msra.mxu0 0.0
    %158 = vmatpush.msra.mxu0 0.0
    %159 = vmatpush.msra.mxu0 0.0
    %160 = vmatpush.msra.mxu0 0.0
    %161 = vmatpush.msra.mxu0 0.0
    %162 = vmatpush.msra.mxu0 0.0
    %163 = vmatpush.msra.mxu0 0.0
    %164 = vmatpush.msra.mxu0 0.0
    %v165 = vand.u32 %v68, 4294901760
    %v166 = vsub.f32 %v68, %v165
    %167 = vmatpush.msra.mxu0 %v166
    %v168 = vand.u32 %v65, 4294901760
    %v169 = vsub.f32 %v65, %v168
    %170 = vmatpush.msra.mxu0 %v169
    %v171 = vand.u32 %v62, 4294901760
    %v172 = vsub.f32 %v62, %v171
    %173 = vmatpush.msra.mxu0 %v172
    %v174 = vand.u32 %v59, 4294901760
    %v175 = vsub.f32 %v59, %v174
    %176 = vmatpush.msra.mxu0 %v175
    %v177 = vand.u32 %v81, 4294901760
    %v178 = vsub.f32 %v81, %v177
    %179 = vmatmul.f32.gmra.mxu0 %v178
    %v180 = vpop.f32.mrf.mxu0
    %v181 = vadd.f32 %v151, %v180
    %182 = vdwg.mxu0
    %183 = vmatpush.msra.mxu0 0.0
    %184 = vmatpush.msra.mxu0 0.0
    %185 = vmatpush.msra.mxu0 0.0
    %186 = vmatpush.msra.mxu0 0.0
    %187 = vmatpush.msra.mxu0 0.0
    %188 = vmatpush.msra.mxu0 0.0
    %189 = vmatpush.msra.mxu0 0.0
    %190 = vmatpush.msra.mxu0 0.0
    %191 = vmatpush.msra.mxu0 0.0
    %192 = vmatpush.msra.mxu0 0.0
    %193 = vmatpush.msra.mxu0 0.0
    %194 = vmatpush.msra.mxu0 0.0
    %v195 = vand.u32 %v68, 4294901760
    %196 = vmatpush.msra.mxu0 %v195
    %v197 = vand.u32 %v65, 4294901760
    %198 = vmatpush.msra.mxu0 %v197
    %v199 = vand.u32 %v62, 4294901760
    %200 = vmatpush.msra.mxu0 %v199
    %v201 = vand.u32 %v59, 4294901760
    %202 = vmatpush.msra.mxu0 %v201
    %v203 = vand.u32 %v81, 4294901760
    %v204 = vsub.f32 %v81, %v203
    %v205 = vand.u32 %v204, 4294901760
    %206 = vmatmul.f32.gmra.mxu0 %v205
    %v207 = vpop.f32.mrf.mxu0
    %v208 = vadd.f32 %v181, %v207
    %209 = vdwg.mxu0
    %210 = vmatpush.msra.mxu0 0.0
    %211 = vmatpush.msra.mxu0 0.0
    %212 = vmatpush.msra.mxu0 0.0
    %213 = vmatpush.msra.mxu0 0.0
    %214 = vmatpush.msra.mxu0 0.0
    %215 = vmatpush.msra.mxu0 0.0
    %216 = vmatpush.msra.mxu0 0.0
    %217 = vmatpush.msra.mxu0 0.0
    %218 = vmatpush.msra.mxu0 0.0
    %219 = vmatpush.msra.mxu0 0.0
    %220 = vmatpush.msra.mxu0 0.0
    %221 = vmatpush.msra.mxu0 0.0
    %v222 = vand.u32 %v68, 4294901760
    %v223 = vsub.f32 %v68, %v222
    %v224 = vand.u32 %v223, 4294901760
    %225 = vmatpush.msra.mxu0 %v224
    %v226 = vand.u32 %v65, 4294901760
    %v227 = vsub.f32 %v65, %v226
    %v228 = vand.u32 %v227, 4294901760
    %229 = vmatpush.msra.mxu0 %v228
    %v230 = vand.u32 %v62, 4294901760
    %v231 = vsub.f32 %v62, %v230
    %v232 = vand.u32 %v231, 4294901760
    %233 = vmatpush.msra.mxu0 %v232
    %v234 = vand.u32 %v59, 4294901760
    %v235 = vsub.f32 %v59, %v234
    %v236 = vand.u32 %v235, 4294901760
    %237 = vmatpush.msra.mxu0 %v236
    %v238 = vand.u32 %v81, 4294901760
    %239 = vmatmul.f32.gmra.mxu0 %v238
    %v240 = vpop.f32.mrf.mxu0
    %v241 = vadd.f32 %v208, %v240
    %242 = vdwg.mxu0
    %243 = vmatpush.msra.mxu0 0.0
    %244 = vmatpush.msra.mxu0 0.0
    %245 = vmatpush.msra.mxu0 0.0
    %246 = vmatpush.msra.mxu0 0.0
    %247 = vmatpush.msra.mxu0 0.0
    %248 = vmatpush.msra.mxu0 0.0
    %249 = vmatpush.msra.mxu0 0.0
    %250 = vmatpush.msra.mxu0 0.0
    %251 = vmatpush.msra.mxu0 0.0
    %252 = vmatpush.msra.mxu0 0.0
    %253 = vmatpush.msra.mxu0 0.0
    %254 = vmatpush.msra.mxu0 0.0
    %v255 = vand.u32 %v68, 4294901760
    %256 = vmatpush.msra.mxu0 %v255
    %v257 = vand.u32 %v65, 4294901760
    %258 = vmatpush.msra.mxu0 %v257
    %v259 = vand.u32 %v62, 4294901760
    %260 = vmatpush.msra.mxu0 %v259
    %v261 = vand.u32 %v59, 4294901760
    %262 = vmatpush.msra.mxu0 %v261
    %v263 = vand.u32 %v81, 4294901760
    %264 = vmatmul.f32.gmra.mxu0 %v263
    %v265 = vpop.f32.mrf.mxu0
    %v266 = vadd.f32 %v241, %v265
    %267 = vdwg.mxu0
    %268 = vmatpush.msra.mxu0 0.0
    %269 = vmatpush.msra.mxu0 0.0
    %270 = vmatpush.msra.mxu0 0.0
    %271 = vmatpush.msra.mxu0 0.0
    %272 = vmatpush.msra.mxu0 0.0
    %273 = vmatpush.msra.mxu0 0.0
    %274 = vmatpush.msra.mxu0 0.0
    %275 = vmatpush.msra.mxu0 0.0
    %276 = vmatpush.msra.mxu0 0.0
    %277 = vmatpush.msra.mxu0 0.0
    %278 = vmatpush.msra.mxu0 0.0
    %279 = vmatpush.msra.mxu0 0.0
    %v280 = vand.u32 %v69, 4294901760
    %281 = vmatpush.msra.mxu0 %v280
    %v282 = vand.u32 %v66, 4294901760
    %283 = vmatpush.msra.mxu0 %v282
    %v284 = vand.u32 %v63, 4294901760
    %285 = vmatpush.msra.mxu0 %v284
    %v286 = vand.u32 %v60, 4294901760
    %287 = vmatpush.msra.mxu0 %v286
    %v288 = vand.u32 %v81, 4294901760
    %v289 = vsub.f32 %v81, %v288
    %v290 = vand.u32 %v289, 4294901760
    %v291 = vsub.f32 %v289, %v290
    %v292 = vand.u32 %v291, 4294901760
    %293 = vmatmul.f32.gmra.mxu0 %v292
    %v294 = vpop.f32.mrf.mxu0
    %v295 = vadd.f32 %v74, %v294
    %296 = vdwg.mxu0
    %297 = vmatpush.msra.mxu0 0.0
    %298 = vmatpush.msra.mxu0 0.0
    %299 = vmatpush.msra.mxu0 0.0
    %300 = vmatpush.msra.mxu0 0.0
    %301 = vmatpush.msra.mxu0 0.0
    %302 = vmatpush.msra.mxu0 0.0
    %303 = vmatpush.msra.mxu0 0.0
    %304 = vmatpush.msra.mxu0 0.0
    %305 = vmatpush.msra.mxu0 0.0
    %306 = vmatpush.msra.mxu0 0.0
    %307 = vmatpush.msra.mxu0 0.0
    %308 = vmatpush.msra.mxu0 0.0
    %v309 = vand.u32 %v69, 4294901760
    %v310 = vsub.f32 %v69, %v309
    %v311 = vand.u32 %v310, 4294901760
    %v312 = vsub.f32 %v310, %v311
    %v313 = vand.u32 %v312, 4294901760
    %314 = vmatpush.msra.mxu0 %v313
    %v315 = vand.u32 %v66, 4294901760
    %v316 = vsub.f32 %v66, %v315
    %v317 = vand.u32 %v316, 4294901760
    %v318 = vsub.f32 %v316, %v317
    %v319 = vand.u32 %v318, 4294901760
    %320 = vmatpush.msra.mxu0 %v319
    %v321 = vand.u32 %v63, 4294901760
    %v322 = vsub.f32 %v63, %v321
    %v323 = vand.u32 %v322, 4294901760
    %v324 = vsub.f32 %v322, %v323
    %v325 = vand.u32 %v324, 4294901760
    %326 = vmatpush.msra.mxu0 %v325
    %v327 = vand.u32 %v60, 4294901760
    %v328 = vsub.f32 %v60, %v327
    %v329 = vand.u32 %v328, 4294901760
    %v330 = vsub.f32 %v328, %v329
    %v331 = vand.u32 %v330, 4294901760
    %332 = vmatpush.msra.mxu0 %v331
    %v333 = vand.u32 %v81, 4294901760
    %334 = vmatmul.f32.gmra.mxu0 %v333
    %v335 = vpop.f32.mrf.mxu0
    %v336 = vadd.f32 %v295, %v335
    %337 = vdwg.mxu0
    %338 = vmatpush.msra.mxu0 0.0
    %339 = vmatpush.msra.mxu0 0.0
    %340 = vmatpush.msra.mxu0 0.0
    %341 = vmatpush.msra.mxu0 0.0
    %342 = vmatpush.msra.mxu0 0.0
    %343 = vmatpush.msra.mxu0 0.0
    %344 = vmatpush.msra.mxu0 0.0
    %345 = vmatpush.msra.mxu0 0.0
    %346 = vmatpush.msra.mxu0 0.0
    %347 = vmatpush.msra.mxu0 0.0
    %348 = vmatpush.msra.mxu0 0.0
    %349 = vmatpush.msra.mxu0 0.0
    %v350 = vand.u32 %v69, 4294901760
    %v351 = vsub.f32 %v69, %v350
    %352 = vmatpush.msra.mxu0 %v351
    %v353 = vand.u32 %v66, 4294901760
    %v354 = vsub.f32 %v66, %v353
    %355 = vmatpush.msra.mxu0 %v354
    %v356 = vand.u32 %v63, 4294901760
    %v357 = vsub.f32 %v63, %v356
    %358 = vmatpush.msra.mxu0 %v357
    %v359 = vand.u32 %v60, 4294901760
    %v360 = vsub.f32 %v60, %v359
    %361 = vmatpush.msra.mxu0 %v360
    %v362 = vand.u32 %v81, 4294901760
    %v363 = vsub.f32 %v81, %v362
    %364 = vmatmul.f32.gmra.mxu0 %v363
    %v365 = vpop.f32.mrf.mxu0
    %v366 = vadd.f32 %v336, %v365
    %367 = vdwg.mxu0
    %368 = vmatpush.msra.mxu0 0.0
    %369 = vmatpush.msra.mxu0 0.0
    %370 = vmatpush.msra.mxu0 0.0
    %371 = vmatpush.msra.mxu0 0.0
    %372 = vmatpush.msra.mxu0 0.0
    %373 = vmatpush.msra.mxu0 0.0
    %374 = vmatpush.msra.mxu0 0.0
    %375 = vmatpush.msra.mxu0 0.0
    %376 = vmatpush.msra.mxu0 0.0
    %377 = vmatpush.msra.mxu0 0.0
    %378 = vmatpush.msra.mxu0 0.0
    %379 = vmatpush.msra.mxu0 0.0
    %v380 = vand.u32 %v69, 4294901760
    %381 = vmatpush.msra.mxu0 %v380
    %v382 = vand.u32 %v66, 4294901760
    %383 = vmatpush.msra.mxu0 %v382
    %v384 = vand.u32 %v63, 4294901760
    %385 = vmatpush.msra.mxu0 %v384
    %v386 = vand.u32 %v60, 4294901760
    %387 = vmatpush.msra.mxu0 %v386
    %v388 = vand.u32 %v81, 4294901760
    %v389 = vsub.f32 %v81, %v388
    %v390 = vand.u32 %v389, 4294901760
    %391 = vmatmul.f32.gmra.mxu0 %v390
    %v392 = vpop.f32.mrf.mxu0
    %v393 = vadd.f32 %v366, %v392
    %394 = vdwg.mxu0
    %395 = vmatpush.msra.mxu0 0.0
    %396 = vmatpush.msra.mxu0 0.0
    %397 = vmatpush.msra.mxu0 0.0
    %398 = vmatpush.msra.mxu0 0.0
    %399 = vmatpush.msra.mxu0 0.0
    %400 = vmatpush.msra.mxu0 0.0
    %401 = vmatpush.msra.mxu0 0.0
    %402 = vmatpush.msra.mxu0 0.0
    %403 = vmatpush.msra.mxu0 0.0
    %404 = vmatpush.msra.mxu0 0.0
    %405 = vmatpush.msra.mxu0 0.0
    %406 = vmatpush.msra.mxu0 0.0
    %v407 = vand.u32 %v69, 4294901760
    %v408 = vsub.f32 %v69, %v407
    %v409 = vand.u32 %v408, 4294901760
    %410 = vmatpush.msra.mxu0 %v409
    %v411 = vand.u32 %v66, 4294901760
    %v412 = vsub.f32 %v66, %v411
    %v413 = vand.u32 %v412, 4294901760
    %414 = vmatpush.msra.mxu0 %v413
    %v415 = vand.u32 %v63, 4294901760
    %v416 = vsub.f32 %v63, %v415
    %v417 = vand.u32 %v416, 4294901760
    %418 = vmatpush.msra.mxu0 %v417
    %v419 = vand.u32 %v60, 4294901760
    %v420 = vsub.f32 %v60, %v419
    %v421 = vand.u32 %v420, 4294901760
    %422 = vmatpush.msra.mxu0 %v421
    %v423 = vand.u32 %v81, 4294901760
    %424 = vmatmul.f32.gmra.mxu0 %v423
    %v425 = vpop.f32.mrf.mxu0
    %v426 = vadd.f32 %v393, %v425
    %427 = vdwg.mxu0
    %428 = vmatpush.msra.mxu0 0.0
    %429 = vmatpush.msra.mxu0 0.0
    %430 = vmatpush.msra.mxu0 0.0
    %431 = vmatpush.msra.mxu0 0.0
    %432 = vmatpush.msra.mxu0 0.0
    %433 = vmatpush.msra.mxu0 0.0
    %434 = vmatpush.msra.mxu0 0.0
    %435 = vmatpush.msra.mxu0 0.0
    %436 = vmatpush.msra.mxu0 0.0
    %437 = vmatpush.msra.mxu0 0.0
    %438 = vmatpush.msra.mxu0 0.0
    %439 = vmatpush.msra.mxu0 0.0
    %v440 = vand.u32 %v69, 4294901760
    %441 = vmatpush.msra.mxu0 %v440
    %v442 = vand.u32 %v66, 4294901760
    %443 = vmatpush.msra.mxu0 %v442
    %v444 = vand.u32 %v63, 4294901760
    %445 = vmatpush.msra.mxu0 %v444
    %v446 = vand.u32 %v60, 4294901760
    %447 = vmatpush.msra.mxu0 %v446
    %v448 = vand.u32 %v81, 4294901760
    %449 = vmatmul.f32.gmra.mxu0 %v448
    %v450 = vpop.f32.mrf.mxu0
    %v451 = vadd.f32 %v426, %v450
    %452 = vdwg.mxu0
    %453 = vmatpush.msra.mxu0 0.0
    %454 = vmatpush.msra.mxu0 0.0
    %455 = vmatpush.msra.mxu0 0.0
    %456 = vmatpush.msra.mxu0 0.0
    %457 = vmatpush.msra.mxu0 0.0
    %458 = vmatpush.msra.mxu0 0.0
    %459 = vmatpush.msra.mxu0 0.0
    %460 = vmatpush.msra.mxu0 0.0
    %461 = vmatpush.msra.mxu0 0.0
    %462 = vmatpush.msra.mxu0 0.0
    %463 = vmatpush.msra.mxu0 0.0
    %464 = vmatpush.msra.mxu0 0.0
    %v465 = vand.u32 %v70, 4294901760
    %466 = vmatpush.msra.mxu0 %v465
    %v467 = vand.u32 %v67, 4294901760
    %468 = vmatpush.msra.mxu0 %v467
    %v469 = vand.u32 %v64, 4294901760
    %470 = vmatpush.msra.mxu0 %v469
    %v471 = vand.u32 %v61, 4294901760
    %472 = vmatpush.msra.mxu0 %v471
    %v473 = vand.u32 %v81, 4294901760
    %v474 = vsub.f32 %v81, %v473
    %v475 = vand.u32 %v474, 4294901760
    %v476 = vsub.f32 %v474, %v475
    %v477 = vand.u32 %v476, 4294901760
    %478 = vmatmul.f32.gmra.mxu0 %v477
    %v479 = vpop.f32.mrf.mxu0
    %v480 = vadd.f32 %v75, %v479
    %481 = vdwg.mxu0
    %482 = vmatpush.msra.mxu0 0.0
    %483 = vmatpush.msra.mxu0 0.0
    %484 = vmatpush.msra.mxu0 0.0
    %485 = vmatpush.msra.mxu0 0.0
    %486 = vmatpush.msra.mxu0 0.0
    %487 = vmatpush.msra.mxu0 0.0
    %488 = vmatpush.msra.mxu0 0.0
    %489 = vmatpush.msra.mxu0 0.0
    %490 = vmatpush.msra.mxu0 0.0
    %491 = vmatpush.msra.mxu0 0.0
    %492 = vmatpush.msra.mxu0 0.0
    %493 = vmatpush.msra.mxu0 0.0
    %v494 = vand.u32 %v70, 4294901760
    %v495 = vsub.f32 %v70, %v494
    %v496 = vand.u32 %v495, 4294901760
    %v497 = vsub.f32 %v495, %v496
    %v498 = vand.u32 %v497, 4294901760
    %499 = vmatpush.msra.mxu0 %v498
    %v500 = vand.u32 %v67, 4294901760
    %v501 = vsub.f32 %v67, %v500
    %v502 = vand.u32 %v501, 4294901760
    %v503 = vsub.f32 %v501, %v502
    %v504 = vand.u32 %v503, 4294901760
    %505 = vmatpush.msra.mxu0 %v504
    %v506 = vand.u32 %v64, 4294901760
    %v507 = vsub.f32 %v64, %v506
    %v508 = vand.u32 %v507, 4294901760
    %v509 = vsub.f32 %v507, %v508
    %v510 = vand.u32 %v509, 4294901760
    %511 = vmatpush.msra.mxu0 %v510
    %v512 = vand.u32 %v61, 4294901760
    %v513 = vsub.f32 %v61, %v512
    %v514 = vand.u32 %v513, 4294901760
    %v515 = vsub.f32 %v513, %v514
    %v516 = vand.u32 %v515, 4294901760
    %517 = vmatpush.msra.mxu0 %v516
    %v518 = vand.u32 %v81, 4294901760
    %519 = vmatmul.f32.gmra.mxu0 %v518
    %v520 = vpop.f32.mrf.mxu0
    %v521 = vadd.f32 %v480, %v520
    %522 = vdwg.mxu0
    %523 = vmatpush.msra.mxu0 0.0
    %524 = vmatpush.msra.mxu0 0.0
    %525 = vmatpush.msra.mxu0 0.0
    %526 = vmatpush.msra.mxu0 0.0
    %527 = vmatpush.msra.mxu0 0.0
    %528 = vmatpush.msra.mxu0 0.0
    %529 = vmatpush.msra.mxu0 0.0
    %530 = vmatpush.msra.mxu0 0.0
    %531 = vmatpush.msra.mxu0 0.0
    %532 = vmatpush.msra.mxu0 0.0
    %533 = vmatpush.msra.mxu0 0.0
    %534 = vmatpush.msra.mxu0 0.0
    %v535 = vand.u32 %v70, 4294901760
    %v536 = vsub.f32 %v70, %v535
    %537 = vmatpush.msra.mxu0 %v536
    %v538 = vand.u32 %v67, 4294901760
    %v539 = vsub.f32 %v67, %v538
    %540 = vmatpush.msra.mxu0 %v539
    %v541 = vand.u32 %v64, 4294901760
    %v542 = vsub.f32 %v64, %v541
    %543 = vmatpush.msra.mxu0 %v542
    %v544 = vand.u32 %v61, 4294901760
    %v545 = vsub.f32 %v61, %v544
    %546 = vmatpush.msra.mxu0 %v545
    %v547 = vand.u32 %v81, 4294901760
    %v548 = vsub.f32 %v81, %v547
    %549 = vmatmul.f32.gmra.mxu0 %v548
    %v550 = vpop.f32.mrf.mxu0
    %v551 = vadd.f32 %v521, %v550
    %552 = vdwg.mxu0
    %553 = vmatpush.msra.mxu0 0.0
    %554 = vmatpush.msra.mxu0 0.0
    %555 = vmatpush.msra.mxu0 0.0
    %556 = vmatpush.msra.mxu0 0.0
    %557 = vmatpush.msra.mxu0 0.0
    %558 = vmatpush.msra.mxu0 0.0
    %559 = vmatpush.msra.mxu0 0.0
    %560 = vmatpush.msra.mxu0 0.0
    %561 = vmatpush.msra.mxu0 0.0
    %562 = vmatpush.msra.mxu0 0.0
    %563 = vmatpush.msra.mxu0 0.0
    %564 = vmatpush.msra.mxu0 0.0
    %v565 = vand.u32 %v70, 4294901760
    %566 = vmatpush.msra.mxu0 %v565
    %v567 = vand.u32 %v67, 4294901760
    %568 = vmatpush.msra.mxu0 %v567
    %v569 = vand.u32 %v64, 4294901760
    %570 = vmatpush.msra.mxu0 %v569
    %v571 = vand.u32 %v61, 4294901760
    %572 = vmatpush.msra.mxu0 %v571
    %v573 = vand.u32 %v81, 4294901760
    %v574 = vsub.f32 %v81, %v573
    %v575 = vand.u32 %v574, 4294901760
    %576 = vmatmul.f32.gmra.mxu0 %v575
    %v577 = vpop.f32.mrf.mxu0
    %v578 = vadd.f32 %v551, %v577
    %579 = vdwg.mxu0
    %580 = vmatpush.msra.mxu0 0.0
    %581 = vmatpush.msra.mxu0 0.0
    %582 = vmatpush.msra.mxu0 0.0
    %583 = vmatpush.msra.mxu0 0.0
    %584 = vmatpush.msra.mxu0 0.0
    %585 = vmatpush.msra.mxu0 0.0
    %586 = vmatpush.msra.mxu0 0.0
    %587 = vmatpush.msra.mxu0 0.0
    %588 = vmatpush.msra.mxu0 0.0
    %589 = vmatpush.msra.mxu0 0.0
    %590 = vmatpush.msra.mxu0 0.0
    %591 = vmatpush.msra.mxu0 0.0
    %v592 = vand.u32 %v70, 4294901760
    %v593 = vsub.f32 %v70, %v592
    %v594 = vand.u32 %v593, 4294901760
    %595 = vmatpush.msra.mxu0 %v594
    %v596 = vand.u32 %v67, 4294901760
    %v597 = vsub.f32 %v67, %v596
    %v598 = vand.u32 %v597, 4294901760
    %599 = vmatpush.msra.mxu0 %v598
    %v600 = vand.u32 %v64, 4294901760
    %v601 = vsub.f32 %v64, %v600
    %v602 = vand.u32 %v601, 4294901760
    %603 = vmatpush.msra.mxu0 %v602
    %v604 = vand.u32 %v61, 4294901760
    %v605 = vsub.f32 %v61, %v604
    %v606 = vand.u32 %v605, 4294901760
    %607 = vmatpush.msra.mxu0 %v606
    %v608 = vand.u32 %v81, 4294901760
    %609 = vmatmul.f32.gmra.mxu0 %v608
    %v610 = vpop.f32.mrf.mxu0
    %v611 = vadd.f32 %v578, %v610
    %612 = vdwg.mxu0
    %613 = vmatpush.msra.mxu0 0.0
    %614 = vmatpush.msra.mxu0 0.0
    %615 = vmatpush.msra.mxu0 0.0
    %616 = vmatpush.msra.mxu0 0.0
    %617 = vmatpush.msra.mxu0 0.0
    %618 = vmatpush.msra.mxu0 0.0
    %619 = vmatpush.msra.mxu0 0.0
    %620 = vmatpush.msra.mxu0 0.0
    %621 = vmatpush.msra.mxu0 0.0
    %622 = vmatpush.msra.mxu0 0.0
    %623 = vmatpush.msra.mxu0 0.0
    %624 = vmatpush.msra.mxu0 0.0
    %v625 = vand.u32 %v70, 4294901760
    %626 = vmatpush.msra.mxu0 %v625
    %v627 = vand.u32 %v67, 4294901760
    %628 = vmatpush.msra.mxu0 %v627
    %v629 = vand.u32 %v64, 4294901760
    %630 = vmatpush.msra.mxu0 %v629
    %v631 = vand.u32 %v61, 4294901760
    %632 = vmatpush.msra.mxu0 %v631
    %v633 = vand.u32 %v81, 4294901760
    %634 = vmatmul.f32.gmra.mxu0 %v633
    %v635 = vpop.f32.mrf.mxu0
    %v636 = vadd.f32 %v611, %v635
    %637 = vdwg.mxu0
    %638 = vmatpush.xpose.msra.mxu0 0.0
    %639 = vmatpush.xpose.msra.mxu0 0.0
    %640 = vmatpush.xpose.msra.mxu0 0.0
    %641 = vmatpush.xpose.msra.mxu0 0.0
    %642 = vmatpush.xpose.msra.mxu0 0.0
    %643 = vmatpush.xpose.msra.mxu0 0.0
    %644 = vmatpush.xpose.msra.mxu0 0.0
    %645 = vmatpush.xpose.msra.mxu0 0.0
    %646 = vmatpush.xpose.msra.mxu0 0.0
    %647 = vmatpush.xpose.msra.mxu0 0.0
    %648 = vmatpush.xpose.msra.mxu0 0.0
    %649 = vmatpush.xpose.msra.mxu0 0.0
    %650 = vmatpush.xpose.msra.mxu0 0.0
    %651 = vmatpush.xpose.msra.mxu0 0.0
    %652 = vmatpush.xpose.msra.mxu0 0.0
    %v653 = vand.u32 %v451, 4294901760
    %654 = vmatpush.xpose.msra.mxu0 %v653
    %v655 = vand.u32 %v266, 4294901760
    %v656 = vsub.f32 %v266, %v655
    %v657 = vand.u32 %v656, 4294901760
    %v658 = vsub.f32 %v656, %v657
    %v659 = vand.u32 %v658, 4294901760
    %660 = vmatmul.f32.gmra.mxu0 %v659
    %v661 = vpop.f32.mrf.mxu0
    %v662 = vadd.f32 0.0, %v661
    %663 = vdwg.mxu0
    %664 = vmatpush.xpose.msra.mxu0 0.0
    %665 = vmatpush.xpose.msra.mxu0 0.0
    %666 = vmatpush.xpose.msra.mxu0 0.0
    %667 = vmatpush.xpose.msra.mxu0 0.0
    %668 = vmatpush.xpose.msra.mxu0 0.0
    %669 = vmatpush.xpose.msra.mxu0 0.0
    %670 = vmatpush.xpose.msra.mxu0 0.0
    %671 = vmatpush.xpose.msra.mxu0 0.0
    %672 = vmatpush.xpose.msra.mxu0 0.0
    %673 = vmatpush.xpose.msra.mxu0 0.0
    %674 = vmatpush.xpose.msra.mxu0 0.0
    %675 = vmatpush.xpose.msra.mxu0 0.0
    %676 = vmatpush.xpose.msra.mxu0 0.0
    %677 = vmatpush.xpose.msra.mxu0 0.0
    %678 = vmatpush.xpose.msra.mxu0 0.0
    %v679 = vand.u32 %v451, 4294901760
    %v680 = vsub.f32 %v451, %v679
    %v681 = vand.u32 %v680, 4294901760
    %v682 = vsub.f32 %v680, %v681
    %v683 = vand.u32 %v682, 4294901760
    %684 = vmatpush.xpose.msra.mxu0 %v683
    %v685 = vand.u32 %v266, 4294901760
    %686 = vmatmul.f32.gmra.mxu0 %v685
    %v687 = vpop.f32.mrf.mxu0
    %v688 = vadd.f32 %v662, %v687
    %689 = vdwg.mxu0
    %690 = vmatpush.xpose.msra.mxu0 0.0
    %691 = vmatpush.xpose.msra.mxu0 0.0
    %692 = vmatpush.xpose.msra.mxu0 0.0
    %693 = vmatpush.xpose.msra.mxu0 0.0
    %694 = vmatpush.xpose.msra.mxu0 0.0
    %695 = vmatpush.xpose.msra.mxu0 0.0
    %696 = vmatpush.xpose.msra.mxu0 0.0
    %697 = vmatpush.xpose.msra.mxu0 0.0
    %698 = vmatpush.xpose.msra.mxu0 0.0
    %699 = vmatpush.xpose.msra.mxu0 0.0
    %700 = vmatpush.xpose.msra.mxu0 0.0
    %701 = vmatpush.xpose.msra.mxu0 0.0
    %702 = vmatpush.xpose.msra.mxu0 0.0
    %703 = vmatpush.xpose.msra.mxu0 0.0
    %704 = vmatpush.xpose.msra.mxu0 0.0
    %v705 = vand.u32 %v451, 4294901760
    %v706 = vsub.f32 %v451, %v705
    %707 = vmatpush.xpose.msra.mxu0 %v706
    %v708 = vand.u32 %v266, 4294901760
    %v709 = vsub.f32 %v266, %v708
    %710 = vmatmul.f32.gmra.mxu0 %v709
    %v711 = vpop.f32.mrf.mxu0
    %v712 = vadd.f32 %v688, %v711
    %713 = vdwg.mxu0
    %714 = vmatpush.xpose.msra.mxu0 0.0
    %715 = vmatpush.xpose.msra.mxu0 0.0
    %716 = vmatpush.xpose.msra.mxu0 0.0
    %717 = vmatpush.xpose.msra.mxu0 0.0
    %718 = vmatpush.xpose.msra.mxu0 0.0
    %719 = vmatpush.xpose.msra.mxu0 0.0
    %720 = vmatpush.xpose.msra.mxu0 0.0
    %721 = vmatpush.xpose.msra.mxu0 0.0
    %722 = vmatpush.xpose.msra.mxu0 0.0
    %723 = vmatpush.xpose.msra.mxu0 0.0
    %724 = vmatpush.xpose.msra.mxu0 0.0
    %725 = vmatpush.xpose.msra.mxu0 0.0
    %726 = vmatpush.xpose.msra.mxu0 0.0
    %727 = vmatpush.xpose.msra.mxu0 0.0
    %728 = vmatpush.xpose.msra.mxu0 0.0
    %v729 = vand.u32 %v451, 4294901760
    %730 = vmatpush.xpose.msra.mxu0 %v729
    %v731 = vand.u32 %v266, 4294901760
    %v732 = vsub.f32 %v266, %v731
    %v733 = vand.u32 %v732, 4294901760
    %734 = vmatmul.f32.gmra.mxu0 %v733
    %v735 = vpop.f32.mrf.mxu0
    %v736 = vadd.f32 %v712, %v735
    %737 = vdwg.mxu0
    %738 = vmatpush.xpose.msra.mxu0 0.0
    %739 = vmatpush.xpose.msra.mxu0 0.0
    %740 = vmatpush.xpose.msra.mxu0 0.0
    %741 = vmatpush.xpose.msra.mxu0 0.0
    %742 = vmatpush.xpose.msra.mxu0 0.0
    %743 = vmatpush.xpose.msra.mxu0 0.0
    %744 = vmatpush.xpose.msra.mxu0 0.0
    %745 = vmatpush.xpose.msra.mxu0 0.0
    %746 = vmatpush.xpose.msra.mxu0 0.0
    %747 = vmatpush.xpose.msra.mxu0 0.0
    %748 = vmatpush.xpose.msra.mxu0 0.0
    %749 = vmatpush.xpose.msra.mxu0 0.0
    %750 = vmatpush.xpose.msra.mxu0 0.0
    %751 = vmatpush.xpose.msra.mxu0 0.0
    %752 = vmatpush.xpose.msra.mxu0 0.0
    %v753 = vand.u32 %v451, 4294901760
    %v754 = vsub.f32 %v451, %v753
    %v755 = vand.u32 %v754, 4294901760
    %756 = vmatpush.xpose.msra.mxu0 %v755
    %v757 = vand.u32 %v266, 4294901760
    %758 = vmatmul.f32.gmra.mxu0 %v757
    %v759 = vpop.f32.mrf.mxu0
    %v760 = vadd.f32 %v736, %v759
    %761 = vdwg.mxu0
    %762 = vmatpush.xpose.msra.mxu0 0.0
    %763 = vmatpush.xpose.msra.mxu0 0.0
    %764 = vmatpush.xpose.msra.mxu0 0.0
    %765 = vmatpush.xpose.msra.mxu0 0.0
    %766 = vmatpush.xpose.msra.mxu0 0.0
    %767 = vmatpush.xpose.msra.mxu0 0.0
    %768 = vmatpush.xpose.msra.mxu0 0.0
    %769 = vmatpush.xpose.msra.mxu0 0.0
    %770 = vmatpush.xpose.msra.mxu0 0.0
    %771 = vmatpush.xpose.msra.mxu0 0.0
    %772 = vmatpush.xpose.msra.mxu0 0.0
    %773 = vmatpush.xpose.msra.mxu0 0.0
    %774 = vmatpush.xpose.msra.mxu0 0.0
    %775 = vmatpush.xpose.msra.mxu0 0.0
    %776 = vmatpush.xpose.msra.mxu0 0.0
    %v777 = vand.u32 %v451, 4294901760
    %778 = vmatpush.xpose.msra.mxu0 %v777
    %v779 = vand.u32 %v266, 4294901760
    %780 = vmatmul.f32.gmra.mxu0 %v779
    %v781 = vpop.f32.mrf.mxu0
    %v782 = vadd.f32 %v760, %v781
    %783 = vdwg.mxu0
    %vm784 = vcmask 64512
    %v785 = vsel %vm784, %v782, -inf
    %786 = vmax.xlane.f32.xlu0 %v785
    %v787 = vpop.xlane.xlu0 %786
    %v788 = vsub.f32 %v782, %v787
    %v789 = vmul.f32 %v788, 1.442695
    %v790 = vpow.pop %v789
    %v791 = vsel %vm784, %v790, 0.0
    %792 = vadd.xlane.f32.xlu0 %v791
    %v793 = vpop.xlane.xlu0 %792
    %v794 = vrcp.pop %v793
    %v795 = vmul.f32 %v793, %v794
    %v796 = vsub.f32 1.0, %v795
    %v797 = vmul.f32 %v794, %v796
    %v798 = vadd.f32 %v794, %v797
    %vm799 = vweird.f32 %v793
    %vm800 = vweird.f32 %v794
    %vm801 = vmor %vm799, %vm800
    %v802 = vsel %vm801, %v794, %v798
    %v803 = vand.u32 2147483647, %v793
    %vm804 = vcmp.eq.f32.partialorder %v803, 8.507059e+37
    %v805 = vand.u32 %v793, 2147483648
    %v806 = vor.u32 1.1754944e-38, %v805
    %v807 = vsel %vm804, %v806, %v802
    %v808 = vmul.f32 %v790, %v807
    %v810 = vsel %vm784, %v808, 0
    %812 = vmatpush.msra.mxu0 0.0
    %813 = vmatpush.msra.mxu0 0.0
    %814 = vmatpush.msra.mxu0 0.0
    %815 = vmatpush.msra.mxu0 0.0
    %816 = vmatpush.msra.mxu0 0.0
    %817 = vmatpush.msra.mxu0 0.0
    %818 = vmatpush.msra.mxu0 0.0
    %819 = vmatpush.msra.mxu0 0.0
    %820 = vmatpush.msra.mxu0 0.0
    %821 = vmatpush.msra.mxu0 0.0
    %822 = vmatpush.msra.mxu0 0.0
    %823 = vmatpush.msra.mxu0 0.0
    %824 = vmatpush.msra.mxu0 0.0
    %825 = vmatpush.msra.mxu0 0.0
    %826 = vmatpush.msra.mxu0 0.0
    %v827 = vand.u32 %v636, 4294901760
    %828 = vmatpush.msra.mxu0 %v827
    %v829 = vand.u32 %v810, 4294901760
    %v830 = vsub.f32 %v810, %v829
    %v831 = vand.u32 %v830, 4294901760
    %v832 = vsub.f32 %v830, %v831
    %v833 = vand.u32 %v832, 4294901760
    %834 = vmatmul.f32.gmra.mxu0 %v833
    %v835 = vpop.f32.mrf.mxu0
    %v836 = vadd.f32 0.0, %v835
    %837 = vdwg.mxu0
    %838 = vmatpush.msra.mxu0 0.0
    %839 = vmatpush.msra.mxu0 0.0
    %840 = vmatpush.msra.mxu0 0.0
    %841 = vmatpush.msra.mxu0 0.0
    %842 = vmatpush.msra.mxu0 0.0
    %843 = vmatpush.msra.mxu0 0.0
    %844 = vmatpush.msra.mxu0 0.0
    %845 = vmatpush.msra.mxu0 0.0
    %846 = vmatpush.msra.mxu0 0.0
    %847 = vmatpush.msra.mxu0 0.0
    %848 = vmatpush.msra.mxu0 0.0
    %849 = vmatpush.msra.mxu0 0.0
    %850 = vmatpush.msra.mxu0 0.0
    %851 = vmatpush.msra.mxu0 0.0
    %852 = vmatpush.msra.mxu0 0.0
    %v853 = vand.u32 %v636, 4294901760
    %v854 = vsub.f32 %v636, %v853
    %v855 = vand.u32 %v854, 4294901760
    %v856 = vsub.f32 %v854, %v855
    %v857 = vand.u32 %v856, 4294901760
    %858 = vmatpush.msra.mxu0 %v857
    %v859 = vand.u32 %v810, 4294901760
    %860 = vmatmul.f32.gmra.mxu0 %v859
    %v861 = vpop.f32.mrf.mxu0
    %v862 = vadd.f32 %v836, %v861
    %863 = vdwg.mxu0
    %864 = vmatpush.msra.mxu0 0.0
    %865 = vmatpush.msra.mxu0 0.0
    %866 = vmatpush.msra.mxu0 0.0
    %867 = vmatpush.msra.mxu0 0.0
    %868 = vmatpush.msra.mxu0 0.0
    %869 = vmatpush.msra.mxu0 0.0
    %870 = vmatpush.msra.mxu0 0.0
    %871 = vmatpush.msra.mxu0 0.0
    %872 = vmatpush.msra.mxu0 0.0
    %873 = vmatpush.msra.mxu0 0.0
    %874 = vmatpush.msra.mxu0 0.0
    %875 = vmatpush.msra.mxu0 0.0
    %876 = vmatpush.msra.mxu0 0.0
    %877 = vmatpush.msra.mxu0 0.0
    %878 = vmatpush.msra.mxu0 0.0
    %v879 = vand.u32 %v636, 4294901760
    %v880 = vsub.f32 %v636, %v879
    %881 = vmatpush.msra.mxu0 %v880
    %v882 = vand.u32 %v810, 4294901760
    %v883 = vsub.f32 %v810, %v882
    %884 = vmatmul.f32.gmra.mxu0 %v883
    %v885 = vpop.f32.mrf.mxu0
    %v886 = vadd.f32 %v862, %v885
    %887 = vdwg.mxu0
    %888 = vmatpush.msra.mxu0 0.0
    %889 = vmatpush.msra.mxu0 0.0
    %890 = vmatpush.msra.mxu0 0.0
    %891 = vmatpush.msra.mxu0 0.0
    %892 = vmatpush.msra.mxu0 0.0
    %893 = vmatpush.msra.mxu0 0.0
    %894 = vmatpush.msra.mxu0 0.0
    %895 = vmatpush.msra.mxu0 0.0
    %896 = vmatpush.msra.mxu0 0.0
    %897 = vmatpush.msra.mxu0 0.0
    %898 = vmatpush.msra.mxu0 0.0
    %899 = vmatpush.msra.mxu0 0.0
    %900 = vmatpush.msra.mxu0 0.0
    %901 = vmatpush.msra.mxu0 0.0
    %902 = vmatpush.msra.mxu0 0.0
    %v903 = vand.u32 %v636, 4294901760
    %904 = vmatpush.msra.mxu0 %v903
    %v905 = vand.u32 %v810, 4294901760
    %v906 = vsub.f32 %v810, %v905
    %v907 = vand.u32 %v906, 4294901760
    %908 = vmatmul.f32.gmra.mxu0 %v907
    %v909 = vpop.f32.mrf.mxu0
    %v910 = vadd.f32 %v886, %v909
    %911 = vdwg.mxu0
    %912 = vmatpush.msra.mxu0 0.0
    %913 = vmatpush.msra.mxu0 0.0
    %914 = vmatpush.msra.mxu0 0.0
    %915 = vmatpush.msra.mxu0 0.0
    %916 = vmatpush.msra.mxu0 0.0
    %917 = vmatpush.msra.mxu0 0.0
    %918 = vmatpush.msra.mxu0 0.0
    %919 = vmatpush.msra.mxu0 0.0
    %920 = vmatpush.msra.mxu0 0.0
    %921 = vmatpush.msra.mxu0 0.0
    %922 = vmatpush.msra.mxu0 0.0
    %923 = vmatpush.msra.mxu0 0.0
    %924 = vmatpush.msra.mxu0 0.0
    %925 = vmatpush.msra.mxu0 0.0
    %926 = vmatpush.msra.mxu0 0.0
    %v927 = vand.u32 %v636, 4294901760
    %v928 = vsub.f32 %v636, %v927
    %v929 = vand.u32 %v928, 4294901760
    %930 = vmatpush.msra.mxu0 %v929
    %v931 = vand.u32 %v810, 4294901760
    %932 = vmatmul.f32.gmra.mxu0 %v931
    %v933 = vpop.f32.mrf.mxu0
    %v934 = vadd.f32 %v910, %v933
    %935 = vdwg.mxu0
    %936 = vmatpush.msra.mxu0 0.0
    %937 = vmatpush.msra.mxu0 0.0
    %938 = vmatpush.msra.mxu0 0.0
    %939 = vmatpush.msra.mxu0 0.0
    %940 = vmatpush.msra.mxu0 0.0
    %941 = vmatpush.msra.mxu0 0.0
    %942 = vmatpush.msra.mxu0 0.0
    %943 = vmatpush.msra.mxu0 0.0
    %944 = vmatpush.msra.mxu0 0.0
    %945 = vmatpush.msra.mxu0 0.0
    %946 = vmatpush.msra.mxu0 0.0
    %947 = vmatpush.msra.mxu0 0.0
    %948 = vmatpush.msra.mxu0 0.0
    %949 = vmatpush.msra.mxu0 0.0
    %950 = vmatpush.msra.mxu0 0.0
    %v951 = vand.u32 %v636, 4294901760
    %952 = vmatpush.msra.mxu0 %v951
    %v953 = vand.u32 %v810, 4294901760
    %954 = vmatmul.f32.gmra.mxu0 %v953
    %v955 = vpop.f32.mrf.mxu0
    %v956 = vadd.f32 %v934, %v955
    %957 = vdwg.mxu0
    %vm958 = vcmask 130048
    %959 = vst.msk [vmem:[#allocation8] sm:$0xff] %vm958, %v956
    // Predicated region
    $region26: #{tpu_custom_call.1} parent=1 // pred_check
      _
    $region27: #{tpu_custom_call.1} parent=1 // pred_check_branch
      %961 = sbr.rel (0) target = $region29
    $region28: #{tpu_custom_call.1} parent=1 // pred_region
      %963 = vsyncadd [#allocation4], 0
      %s965 = sshll.u32 [#allocation8], 4
      %s966 = int_to_ptr.vmem [resolvable:$true] %s965
      %s967 = sshll.u32 %s3, 4
      %s968 = int_to_ptr.hbm [resolvable:$true] %s967
      %970 = dma.vmem_to_hbm [thread:$0]  %s966, 128, %s968, [#allocation4]
    $region29: #{tpu_custom_call.1} parent=1 // pred_fallthru
      _
    // Predicated region
    $region30: #{tpu_custom_call.1} parent=1 // pred_check
      _
    $region31: #{tpu_custom_call.1} parent=1 // pred_check_branch
      %972 = sbr.rel (0) target = $region33
    $region32: #{tpu_custom_call.1} parent=1 // pred_region
      %974 = dma.done [#allocation4], 128
    $region33: #{tpu_custom_call.1} parent=1 // pred_fallthru
      _
    %975 = vsyncpa [#allocation3], 1
    %976 = vsyncpa [#allocation6], 1
    %977 = vsyncpa [#allocation4], 1

</llo_original>
